<compile_context>
chip_gen: v7x
topology: tpu7x:2x2x1
jax: 0.10.0
libtpu: 0.0.40
codegen_flags: <defaults>
</compile_context>

<pallas_src>
import jax
import jax.numpy as jnp
from jax.experimental import pallas as pl
from jax.experimental.pallas import tpu as pltpu


# ----- parameter slab layout (rows of a (96, 128) bf16 buffer) -----
# Every block starts on a 16-row boundary (bf16 sublane tile); columns at 0.
_W1_ROW, _W2_ROW, _W3_ROW = 0, 16, 32      # W1 (8,16 padded), W2 (6,8), W3 (4,6)
_B1_ROW, _B2_ROW, _B3_ROW = 48, 64, 80     # b1 (8,1), b2 (6,1), b3 (4,1)
_SLAB_ROWS, _SLAB_COLS = 96, 128
_FEAT_PAD = 16                              # input features 13 padded to 16
_LANE = 128


def _mlp_kernel(x_ref, p_ref, o_ref):
    # x_ref: (16, TILE_B) f32 (batch on the lane axis).  Cast once to bf16.
    x = x_ref[...].astype(jnp.bfloat16)                     # (16, TB)

    w1 = p_ref[_W1_ROW:_W1_ROW + 8, 0:_FEAT_PAD]            # (8, 16) bf16
    w2 = p_ref[_W2_ROW:_W2_ROW + 6, 0:8]                    # (6, 8)
    w3 = p_ref[_W3_ROW:_W3_ROW + 4, 0:6]                    # (4, 6)
    b1 = p_ref[_B1_ROW:_B1_ROW + 8, 0:1]                    # (8, 1)
    b2 = p_ref[_B2_ROW:_B2_ROW + 6, 0:1]                    # (6, 1)
    b3 = p_ref[_B3_ROW:_B3_ROW + 4, 0:1]                    # (4, 1)

    # h = relu(W @ X + b): bf16 operands, f32 accumulation, lane-dense results.
    h1 = jnp.dot(w1, x, preferred_element_type=jnp.float32) + b1        # (8, TB)
    h1 = jnp.maximum(h1, 0.0)
    h2 = jnp.dot(w2, h1.astype(jnp.bfloat16),
                 preferred_element_type=jnp.float32) + b2               # (6, TB)
    h2 = jnp.maximum(h2, 0.0)
    out = jnp.dot(w3, h2.astype(jnp.bfloat16),
                  preferred_element_type=jnp.float32) + b3              # (4, TB)
    o_ref[...] = out.astype(o_ref.dtype)


def _round_up(n, m):
    return ((n + m - 1) // m) * m


def _pack_params(params):
    """Pack weights (PyTorch (out,in) orientation) + biases into one bf16 slab."""
    slab = jnp.zeros((_SLAB_ROWS, _SLAB_COLS), jnp.float32)
    slab = slab.at[_W1_ROW:_W1_ROW + 8, 0:13].set(params["fc1_w"].astype(jnp.float32))
    slab = slab.at[_W2_ROW:_W2_ROW + 6, 0:8].set(params["fc2_w"].astype(jnp.float32))
    slab = slab.at[_W3_ROW:_W3_ROW + 4, 0:6].set(params["out_w"].astype(jnp.float32))
    slab = slab.at[_B1_ROW:_B1_ROW + 8, 0].set(params["fc1_b"].astype(jnp.float32))
    slab = slab.at[_B2_ROW:_B2_ROW + 6, 0].set(params["fc2_b"].astype(jnp.float32))
    slab = slab.at[_B3_ROW:_B3_ROW + 4, 0].set(params["out_b"].astype(jnp.float32))
    return slab.astype(jnp.bfloat16)


def net_forward(x, params, tile_b=32768):
    """x: (B, 13) float32. params: PyTorch-convention (out,in) weights + biases.

    Returns (B, 4) float32 (bf16 MXU operands, f32 accumulation).
    """
    B = x.shape[0]
    x = x.astype(jnp.float32)

    # Batch tile (lane axis): multiple of 128, capped so the grid has >=4
    # steps when B is large enough (keeps both v7x TensorCores busy).
    B128 = _round_up(B, _LANE)
    tile_cap = _round_up(pl.cdiv(B128, 4), _LANE)
    tile_b = max(_LANE, min(_round_up(tile_b, _LANE), tile_cap))
    Bp = _round_up(B128, tile_b)

    # Batch-on-lanes layout: x^T padded to (16, Bp).
    xT = jnp.pad(x.T, ((0, _FEAT_PAD - 13), (0, Bp - B)))

    slab = _pack_params(params)
    grid = (Bp // tile_b,)

    outT = pl.pallas_call(
        _mlp_kernel,
        out_shape=jax.ShapeDtypeStruct((4, Bp), jnp.float32),
        grid=grid,
        in_specs=[
            pl.BlockSpec((_FEAT_PAD, tile_b), lambda i: (0, i)),       # x^T tile
            pl.BlockSpec((_SLAB_ROWS, _SLAB_COLS), lambda i: (0, 0)),  # resident params
        ],
        out_specs=pl.BlockSpec((4, tile_b), lambda i: (0, i)),          # lane-dense out^T
        compiler_params=pltpu.CompilerParams(
            dimension_semantics=("parallel",),
            vmem_limit_bytes=32 * 1024 * 1024,
        ),
    )(xT, slab)

    return outT[:, :B].T


def init_params(key):
    """PyTorch nn.Linear default init: U(-1/sqrt(fan_in), 1/sqrt(fan_in))."""
    def linear(key, fan_in, fan_out):
        kw, kb = jax.random.split(key)
        bound = 1.0 / jnp.sqrt(fan_in)
        w = jax.random.uniform(kw, (fan_out, fan_in), jnp.float32, -bound, bound)
        b = jax.random.uniform(kb, (fan_out,), jnp.float32, -bound, bound)
        return w, b

    k1, k2, k3 = jax.random.split(key, 3)
    fc1_w, fc1_b = linear(k1, 13, 8)
    fc2_w, fc2_b = linear(k2, 8, 6)
    out_w, out_b = linear(k3, 6, 4)
    return {
        "fc1_w": fc1_w, "fc1_b": fc1_b,
        "fc2_w": fc2_w, "fc2_b": fc2_b,
        "out_w": out_w, "out_b": out_b,
    }


def reference_forward(x, params):
    h1 = jnp.maximum(x @ params["fc1_w"].T + params["fc1_b"], 0.0)
    h2 = jnp.maximum(h1 @ params["fc2_w"].T + params["fc2_b"], 0.0)
    return h2 @ params["out_w"].T + params["out_b"]


if __name__ == "__main__":
    key = jax.random.PRNGKey(0)
    kx, kx2, kp = jax.random.split(key, 3)
    params = init_params(kp)

    # bf16 operands / f32 accumulation -> tolerances relaxed vs pure f32.
    ATOL = 5e-2
    RTOL = 5e-2

    # Small batch (single grid step; lane padding 8 -> 128 exercised).
    B = 8
    x = jax.random.normal(kx, (B, 13), dtype=jnp.float32)
    out = jax.block_until_ready(net_forward(x, params))
    ref = reference_forward(x, params)
    assert out.shape == (B, 4), out.shape
    assert jnp.allclose(out, ref, atol=ATOL, rtol=RTOL), jnp.max(jnp.abs(out - ref))

    # Ragged batch exercising the multi-step grid + padding + tile-cap path.
    B2 = 300
    x2 = jax.random.normal(kx2, (B2, 13), dtype=jnp.float32)
    out2 = jax.block_until_ready(net_forward(x2, params, tile_b=200))
    ref2 = reference_forward(x2, params)
    assert out2.shape == (B2, 4), out2.shape
    assert jnp.allclose(out2, ref2, atol=ATOL, rtol=RTOL), jnp.max(jnp.abs(out2 - ref2))

    print("KERNEL_OK")
</pallas_src>

<mosaic_0001>
module attributes {stable_mosaic.version = 11 : i64} {
  func.func @_mlp_kernel(%arg0: i32, %arg1: memref<16x128xf32, #tpu.memory_space<vmem>>, %arg2: memref<96x128xbf16, #tpu.memory_space<vmem>>, %arg3: memref<4x128xf32, #tpu.memory_space<vmem>>) attributes {dimension_semantics = [#tpu.dimension_semantics<parallel>], iteration_bounds = array<i64: 1>, scalar_prefetch = 0 : i64, scratch_operands = 0 : i64, tpu.core_type = #tpu.core_type<tc>, window_params = [{transform_indices = @transform_0, window_bounds = array<i64: 16, 128>}, {pipeline_mode = #tpu.pipeline_mode<synchronous>, transform_indices = @transform_1, window_bounds = array<i64: 96, 128>}, {transform_indices = @transform_2, window_bounds = array<i64: 4, 128>}]} {
    %c0 = arith.constant 0 : index
    %c0_0 = arith.constant 0 : index
    %0 = vector.load %arg1[%c0, %c0_0] : memref<16x128xf32, #tpu.memory_space<vmem>>, vector<16x128xf32>
    %1 = arith.truncf %0 : vector<16x128xf32> to vector<16x128xbf16>
    %c0_1 = arith.constant 0 : index
    %c0_2 = arith.constant 0 : index
    %2 = vector.load %arg2[%c0_1, %c0_2] : memref<96x128xbf16, #tpu.memory_space<vmem>>, vector<8x16xbf16>
    %c16 = arith.constant 16 : index
    %c0_3 = arith.constant 0 : index
    %3 = vector.load %arg2[%c16, %c0_3] : memref<96x128xbf16, #tpu.memory_space<vmem>>, vector<6x8xbf16>
    %c32 = arith.constant 32 : index
    %c0_4 = arith.constant 0 : index
    %4 = vector.load %arg2[%c32, %c0_4] : memref<96x128xbf16, #tpu.memory_space<vmem>>, vector<4x6xbf16>
    %c48 = arith.constant 48 : index
    %c0_5 = arith.constant 0 : index
    %5 = vector.load %arg2[%c48, %c0_5] : memref<96x128xbf16, #tpu.memory_space<vmem>>, vector<8x1xbf16>
    %c64 = arith.constant 64 : index
    %c0_6 = arith.constant 0 : index
    %6 = vector.load %arg2[%c64, %c0_6] : memref<96x128xbf16, #tpu.memory_space<vmem>>, vector<6x1xbf16>
    %c80 = arith.constant 80 : index
    %c0_7 = arith.constant 0 : index
    %7 = vector.load %arg2[%c80, %c0_7] : memref<96x128xbf16, #tpu.memory_space<vmem>>, vector<4x1xbf16>
    %cst = arith.constant dense<0.000000e+00> : vector<8x128xf32>
    %8 = tpu.matmul %2, %1, %cst {dimension_numbers = #tpu.dot_dimension_numbers<[1], [0], [0], [1], [0, 0, 1, 1], [], []>} : vector<8x16xbf16>, vector<16x128xbf16>, vector<8x128xf32> -> vector<8x128xf32>
    %9 = arith.extf %5 : vector<8x1xbf16> to vector<8x1xf32>
    %10 = vector.broadcast %9 : vector<8x1xf32> to vector<8x128xf32>
    %11 = arith.addf %8, %10 : vector<8x128xf32>
    %cst_8 = arith.constant 0.000000e+00 : f32
    %12 = vector.broadcast %cst_8 : f32 to vector<8x128xf32>
    %13 = arith.maximumf %11, %12 : vector<8x128xf32>
    %14 = arith.truncf %13 : vector<8x128xf32> to vector<8x128xbf16>
    %cst_9 = arith.constant dense<0.000000e+00> : vector<6x128xf32>
    %15 = tpu.matmul %3, %14, %cst_9 {dimension_numbers = #tpu.dot_dimension_numbers<[1], [0], [0], [1], [0, 0, 1, 1], [], []>} : vector<6x8xbf16>, vector<8x128xbf16>, vector<6x128xf32> -> vector<6x128xf32>
    %16 = arith.extf %6 : vector<6x1xbf16> to vector<6x1xf32>
    %17 = vector.broadcast %16 : vector<6x1xf32> to vector<6x128xf32>
    %18 = arith.addf %15, %17 : vector<6x128xf32>
    %cst_10 = arith.constant 0.000000e+00 : f32
    %19 = vector.broadcast %cst_10 : f32 to vector<6x128xf32>
    %20 = arith.maximumf %18, %19 : vector<6x128xf32>
    %21 = arith.truncf %20 : vector<6x128xf32> to vector<6x128xbf16>
    %cst_11 = arith.constant dense<0.000000e+00> : vector<4x128xf32>
    %22 = tpu.matmul %4, %21, %cst_11 {dimension_numbers = #tpu.dot_dimension_numbers<[1], [0], [0], [1], [0, 0, 1, 1], [], []>} : vector<4x6xbf16>, vector<6x128xbf16>, vector<4x128xf32> -> vector<4x128xf32>
    %23 = arith.extf %7 : vector<4x1xbf16> to vector<4x1xf32>
    %24 = vector.broadcast %23 : vector<4x1xf32> to vector<4x128xf32>
    %25 = arith.addf %22, %24 : vector<4x128xf32>
    %c0_12 = arith.constant 0 : index
    %c0_13 = arith.constant 0 : index
    %26 = vector.load %arg3[%c0_12, %c0_13] : memref<4x128xf32, #tpu.memory_space<vmem>>, vector<4x128xf32>
    tpu.vector_store %arg3[%c0_12, %c0_13], %25 {strides = array<i32>} : memref<4x128xf32, #tpu.memory_space<vmem>>, vector<4x128xf32>,
    return
  }
  func.func @transform_0(%arg0: i32) -> (i32, i32) {
    %c0_i32 = arith.constant 0 : i32
    %c0_i32_0 = arith.constant 0 : i32
    return %c0_i32, %arg0 : i32, i32
  }
  func.func @transform_1(%arg0: i32) -> (i32, i32) {
    %c0_i32 = arith.constant 0 : i32
    %c0_i32_0 = arith.constant 0 : i32
    %c0_i32_1 = arith.constant 0 : i32
    return %c0_i32, %c0_i32_0 : i32, i32
  }
  func.func @transform_2(%arg0: i32) -> (i32, i32) {
    %c0_i32 = arith.constant 0 : i32
    %c0_i32_0 = arith.constant 0 : i32
    return %c0_i32, %arg0 : i32, i32
  }
}

</mosaic_0001>

<llo_original>
// kernel: tpu_custom_call.1
$region0: #{tpu_custom_call.1}
  #allocation0 [shape = 'u32[]', space=smem, size = 0x4, offset = 0x4, fixed_abs, tag = 'smem constant byte address 0x4 - core index']
  #allocation1 [shape = 'u32[144,128]{1,0:T(1,128)}', space=vmem, size = 0x12000, scoped, tag = 'internal scratch']
  %s0 = inlined_call_operand.hbm [shape: f32[16,128], index: 0, kind: input, shape index: {}]
  %s1 = inlined_call_operand.hbm [shape: bf16[96,128], index: 1, kind: input, shape index: {}]
  %s2 = inlined_call_operand.hbm [shape: f32[4,128], index: 2, kind: output, shape index: {}]
  %s3 = sld [smem:[#allocation0]]
  $region26: #{tpu_custom_call.1} parent=0
    _
  %s5 = ssub.s32 1, %s3
  %s6 = scalar_select 0, %s5, %s3
  $region1: #{tpu_custom_call.1} parent=0
    #allocation2 [shape = 'u8[8192]{0}', space=vmem, size = 0x2000, scoped, tag = 'input window, operand 0, single buffered']
    #allocation3 [shape = 's32[1]{0}', space=sflag, size = 0x4, scoped, tag = 'scoped memory for tpu_custom_call.1']
    #allocation4 [shape = 's32[1]{0}', space=sflag, size = 0x4, scoped, tag = 'scoped memory for tpu_custom_call.1']
    #allocation5 [shape = 'u8[24576]{0}', space=vmem, size = 0x6000, scoped, tag = 'input window, operand 1, single buffered']
    #allocation6 [shape = 's32[1]{0}', space=sflag, size = 0x4, scoped, tag = 'scoped memory for tpu_custom_call.1']
    #allocation7 [shape = 'u8[2048]{0}', space=vmem, size = 0x800, scoped, tag = 'output window, operand 0, single buffered']
    %7 = vsyncpa [#allocation3], 0
    %8 = vsyncpa [#allocation6], 0
    %9 = vsyncpa [#allocation4], 0
    // Predicated region
    $region2: #{tpu_custom_call.1} parent=1 // pred_check
      _
    $region3: #{tpu_custom_call.1} parent=1 // pred_check_branch
      %11 = sbr.rel (0) target = $region5
    $region4: #{tpu_custom_call.1} parent=1 // pred_region
      %s13 = ssub.s32 256, 256
      %14 = vsyncadd [#allocation3], %s13
      %s15 = sshll.u32 [#allocation2], 4
      %s16 = int_to_ptr.vmem [resolvable:$true] %s15
      %21 = dma.hbm_to_vmem [thread:$0]  %s0, 256, %s16, [#allocation3], 128, 128, 8
    $region5: #{tpu_custom_call.1} parent=1 // pred_fallthru
      _
    // Predicated region
    $region6: #{tpu_custom_call.1} parent=1 // pred_check
      _
    $region7: #{tpu_custom_call.1} parent=1 // pred_check_branch
      %23 = sbr.rel (0) target = $region9
    $region8: #{tpu_custom_call.1} parent=1 // pred_region
      %s25 = ssub.s32 768, 768
      %26 = vsyncadd [#allocation6], %s25
      %s27 = sshll.u32 [#allocation5], 4
      %s28 = int_to_ptr.vmem [resolvable:$true] %s27
      %33 = dma.hbm_to_vmem [thread:$0]  %s1, 768, %s28, [#allocation6], 64, 64, 4
    $region9: #{tpu_custom_call.1} parent=1 // pred_fallthru
      _
    // Predicated region
    $region10: #{tpu_custom_call.1} parent=1 // pred_check
      _
    $region11: #{tpu_custom_call.1} parent=1 // pred_check_branch
      %35 = sbr.rel (0) target = $region13
    $region12: #{tpu_custom_call.1} parent=1 // pred_region
      %36 = dma.done [#allocation3], 256
    $region13: #{tpu_custom_call.1} parent=1 // pred_fallthru
      _
    // Predicated region
    $region14: #{tpu_custom_call.1} parent=1 // pred_check
      _
    $region15: #{tpu_custom_call.1} parent=1 // pred_check_branch
      %38 = sbr.rel (0) target = $region17
    $region16: #{tpu_custom_call.1} parent=1 // pred_region
      %39 = dma.done [#allocation6], 768
    $region17: #{tpu_custom_call.1} parent=1 // pred_fallthru
      _
    %v41 = vld [vmem:[#allocation2] sm:$0xff]
    %v42 = vld [vmem:[#allocation2 + $0x8] sm:$0xff]
    %v43 = vpack.c.bf16 %v42, %v41
    %v44 = vld [vmem:[#allocation5] sm:$0xf]
    %v45 = vld [vmem:[#allocation5 + $0x8] sm:$0x7]
    %v46 = vld [vmem:[#allocation5 + $0x10] sm:$0x3]
    %v47 = vld [vmem:[#allocation5 + $0x18] sm:$0xf]
    %v48 = vld [vmem:[#allocation5 + $0x20] sm:$0x7]
    %v49 = vld [vmem:[#allocation5 + $0x28] sm:$0x3]
    %v50 = vunpack.c.l.bf16 %v47
    %52 = vset.pattern.permute.xlu0 0
    %53 = vperm.xlu0 %52, %v50
    %v54 = vpop.permute.xlu0 %53
    %vm56 = vcmask 130048
    %v58 = vsel %vm56, %v44, 0
    %60 = vmatprep.subr.bf16.mxu0 0
    %61 = vmatpush1.bf16.msra.mxu0 %v43
    %62 = vmatprep.subr.bf16.mxu0 0
    %63 = vmatpush1.bf16.msra.mxu0 0
    %64 = vmatprep.subr.bf16.mxu0 0
    %65 = vmatpush1.bf16.msra.mxu0 0
    %66 = vmatprep.subr.bf16.mxu0 0
    %67 = vmatpush1.bf16.msra.mxu0 0
    %68 = vmatprep.subr.bf16.mxu0 0
    %69 = vmatpush1.bf16.msra.mxu0 0
    %70 = vmatprep.subr.bf16.mxu0 0
    %71 = vmatpush1.bf16.msra.mxu0 0
    %72 = vmatprep.subr.bf16.mxu0 0
    %73 = vmatpush1.bf16.msra.mxu0 0
    %74 = vmatprep.subr.bf16.mxu0 0
    %75 = vmatpush1.bf16.msra.mxu0 0
    %76 = vmatprep.subr.bf16.mxu0 0
    %77 = vmatpush1.bf16.msra.mxu0 0
    %78 = vmatprep.subr.bf16.mxu0 0
    %79 = vmatpush1.bf16.msra.mxu0 0
    %80 = vmatprep.subr.bf16.mxu0 0
    %81 = vmatpush1.bf16.msra.mxu0 0
    %82 = vmatprep.subr.bf16.mxu0 0
    %83 = vmatpush1.bf16.msra.mxu0 0
    %84 = vmatprep.subr.bf16.mxu0 0
    %85 = vmatpush1.bf16.msra.mxu0 0
    %86 = vmatprep.subr.bf16.mxu0 0
    %87 = vmatpush1.bf16.msra.mxu0 0
    %88 = vmatprep.subr.bf16.mxu0 0
    %89 = vmatpush1.bf16.msra.mxu0 0
    %90 = vmatprep.subr.bf16.mxu0 0
    %91 = vmatpush1.bf16.msra.mxu0 0
    %92 = vmatprep.mubr.bf16.mxu0 0
    %93 = vmatmul.mubr.bf16.gmra.mrb[0].mxu0 %v58
    %v94 = vpop.f32.mrb[0].mxu0
    %v95 = vadd.f32 %v54, %v94
    %v96 = vpop.f32.mrb[0].mxu0
    %v97 = vpop.f32.mrb[0].mxu0
    %v98 = vpop.f32.mrb[0].mxu0
    %99 = vdwg.mxu0
    %v100 = vmax.f32 %v95, 0.0
    %v101 = vpack.c.bf16 %v100, %v100
    %v102 = vunpack.c.l.bf16 %v48
    %104 = vset.pattern.permute.xlu0 0
    %105 = vperm.xlu0 %104, %v102
    %v106 = vpop.permute.xlu0 %105
    %vm108 = vcmask 64512
    %v110 = vsel %vm108, %v45, 0
    %vm112 = vcmask 1043456
    %v114 = vsel %vm112, %v101, 0
    %116 = vmatprep.subr.bf16.mxu0 0
    %117 = vmatpush1.bf16.msra.mxu0 %v114
    %118 = vmatprep.subr.bf16.mxu0 0
    %119 = vmatpush1.bf16.msra.mxu0 0
    %120 = vmatprep.subr.bf16.mxu0 0
    %121 = vmatpush1.bf16.msra.mxu0 0
    %122 = vmatprep.subr.bf16.mxu0 0
    %123 = vmatpush1.bf16.msra.mxu0 0
    %124 = vmatprep.subr.bf16.mxu0 0
    %125 = vmatpush1.bf16.msra.mxu0 0
    %126 = vmatprep.subr.bf16.mxu0 0
    %127 = vmatpush1.bf16.msra.mxu0 0
    %128 = vmatprep.subr.bf16.mxu0 0
    %129 = vmatpush1.bf16.msra.mxu0 0
    %130 = vmatprep.subr.bf16.mxu0 0
    %131 = vmatpush1.bf16.msra.mxu0 0
    %132 = vmatprep.subr.bf16.mxu0 0
    %133 = vmatpush1.bf16.msra.mxu0 0
    %134 = vmatprep.subr.bf16.mxu0 0
    %135 = vmatpush1.bf16.msra.mxu0 0
    %136 = vmatprep.subr.bf16.mxu0 0
    %137 = vmatpush1.bf16.msra.mxu0 0
    %138 = vmatprep.subr.bf16.mxu0 0
    %139 = vmatpush1.bf16.msra.mxu0 0
    %140 = vmatprep.subr.bf16.mxu0 0
    %141 = vmatpush1.bf16.msra.mxu0 0
    %142 = vmatprep.subr.bf16.mxu0 0
    %143 = vmatpush1.bf16.msra.mxu0 0
    %144 = vmatprep.subr.bf16.mxu0 0
    %145 = vmatpush1.bf16.msra.mxu0 0
    %146 = vmatprep.subr.bf16.mxu0 0
    %147 = vmatpush1.bf16.msra.mxu0 0
    %148 = vmatprep.mubr.bf16.mxu0 0
    %149 = vmatmul.mubr.bf16.gmra.mrb[0].mxu0 %v110
    %v150 = vpop.f32.mrb[0].mxu0
    %v151 = vadd.f32 %v106, %v150
    %v152 = vpop.f32.mrb[0].mxu0
    %v153 = vpop.f32.mrb[0].mxu0
    %v154 = vpop.f32.mrb[0].mxu0
    %155 = vdwg.mxu0
    %v156 = vmax.f32 %v151, 0.0
    %v157 = vpack.c.bf16 %v156, %v156
    %v158 = vunpack.c.l.bf16 %v49
    %160 = vset.pattern.permute.xlu0 0
    %161 = vperm.xlu0 %160, %v158
    %v162 = vpop.permute.xlu0 %161
    %vm164 = vcmask 48128
    %v166 = vsel %vm164, %v46, 0
    %vm168 = vcmask 1042432
    %v170 = vsel %vm168, %v157, 0
    %172 = vmatprep.subr.bf16.mxu0 0
    %173 = vmatpush1.bf16.msra.mxu0 %v170
    %174 = vmatprep.subr.bf16.mxu0 0
    %175 = vmatpush1.bf16.msra.mxu0 0
    %176 = vmatprep.subr.bf16.mxu0 0
    %177 = vmatpush1.bf16.msra.mxu0 0
    %178 = vmatprep.subr.bf16.mxu0 0
    %179 = vmatpush1.bf16.msra.mxu0 0
    %180 = vmatprep.subr.bf16.mxu0 0
    %181 = vmatpush1.bf16.msra.mxu0 0
    %182 = vmatprep.subr.bf16.mxu0 0
    %183 = vmatpush1.bf16.msra.mxu0 0
    %184 = vmatprep.subr.bf16.mxu0 0
    %185 = vmatpush1.bf16.msra.mxu0 0
    %186 = vmatprep.subr.bf16.mxu0 0
    %187 = vmatpush1.bf16.msra.mxu0 0
    %188 = vmatprep.subr.bf16.mxu0 0
    %189 = vmatpush1.bf16.msra.mxu0 0
    %190 = vmatprep.subr.bf16.mxu0 0
    %191 = vmatpush1.bf16.msra.mxu0 0
    %192 = vmatprep.subr.bf16.mxu0 0
    %193 = vmatpush1.bf16.msra.mxu0 0
    %194 = vmatprep.subr.bf16.mxu0 0
    %195 = vmatpush1.bf16.msra.mxu0 0
    %196 = vmatprep.subr.bf16.mxu0 0
    %197 = vmatpush1.bf16.msra.mxu0 0
    %198 = vmatprep.subr.bf16.mxu0 0
    %199 = vmatpush1.bf16.msra.mxu0 0
    %200 = vmatprep.subr.bf16.mxu0 0
    %201 = vmatpush1.bf16.msra.mxu0 0
    %202 = vmatprep.subr.bf16.mxu0 0
    %203 = vmatpush1.bf16.msra.mxu0 0
    %204 = vmatprep.mubr.bf16.mxu0 0
    %205 = vmatmul.mubr.bf16.gmra.mrb[0].mxu0 %v166
    %v206 = vpop.f32.mrb[0].mxu0
    %v207 = vadd.f32 %v162, %v206
    %v208 = vpop.f32.mrb[0].mxu0
    %v209 = vpop.f32.mrb[0].mxu0
    %v210 = vpop.f32.mrb[0].mxu0
    %211 = vdwg.mxu0
    %212 = vst [vmem:[#allocation7] sm:$0xf] %v207
    // Predicated region
    $region18: #{tpu_custom_call.1} parent=1 // pred_check
      _
    $region19: #{tpu_custom_call.1} parent=1 // pred_check_branch
      %214 = sbr.rel (0) target = $region21
    $region20: #{tpu_custom_call.1} parent=1 // pred_region
      %s216 = ssub.s32 64, 64
      %217 = vsyncadd [#allocation4], %s216
      %s219 = sshll.u32 [#allocation7], 4
      %s220 = int_to_ptr.vmem [resolvable:$true] %s219
      %222 = dma.vmem_to_hbm [thread:$0]  %s220, 64, %s2, [#allocation4]
    $region21: #{tpu_custom_call.1} parent=1 // pred_fallthru
      _
    // Predicated region
    $region22: #{tpu_custom_call.1} parent=1 // pred_check
      _
    $region23: #{tpu_custom_call.1} parent=1 // pred_check_branch
      %224 = sbr.rel (0) target = $region25
    $region24: #{tpu_custom_call.1} parent=1 // pred_region
      %225 = dma.done [#allocation4], 64
    $region25: #{tpu_custom_call.1} parent=1 // pred_fallthru
      _
    %226 = vsyncpa [#allocation3], 1
    %227 = vsyncpa [#allocation6], 1
    %228 = vsyncpa [#allocation4], 1

</llo_original>
